<compile_context>
chip_gen: v7x
topology: tpu7x:2x2x1
jax: 0.10.0
libtpu: 0.0.40
codegen_flags: <defaults>
</compile_context>

<pallas_src>
import functools

import jax
import jax.numpy as jnp
from jax import lax
from jax.experimental import pallas as pl
from jax.experimental.pallas import tpu as pltpu


# ---------------------------------------------------------------------------
# Pallas kernel
# ---------------------------------------------------------------------------
def _layernorm2d_kernel(x_ref, g_ref, b_ref, o_ref, *, eps):
    """Per-pixel LayerNorm over the channel axis of a (1, C, T) tile.

    x_ref: (1, C, t_hw)   activations (channels on sublanes, pixels on lanes)
    g_ref: (1, C, 1)      per-channel scale (broadcast along lanes)
    b_ref: (1, C, 1)      per-channel shift
    """
    x = x_ref[...].astype(jnp.float32)                 # (1, C, T)
    u = jnp.mean(x, axis=1, keepdims=True)             # (1, 1, T)
    xc = x - u
    s = jnp.mean(xc * xc, axis=1, keepdims=True)       # biased variance
    inv = lax.rsqrt(s + eps)                           # EUP slot (free vs VALU)
    y = xc * inv
    y = y * g_ref[...].astype(jnp.float32) + b_ref[...].astype(jnp.float32)
    o_ref[...] = y.astype(o_ref.dtype)


# ---------------------------------------------------------------------------
# Wrapper
# ---------------------------------------------------------------------------
def _pick_spatial_block(hw, c, itemsize=4, target_bytes=2 * 1024 * 1024):
    """Largest lane-aligned spatial tile with ~target_bytes per input block."""
    tgt = max(128, target_bytes // (itemsize * c))
    tgt = (tgt // 128) * 128
    if hw <= tgt:
        return hw          # full spatial extent (always a legal block dim)
    return tgt             # multiple of 128; last grid step may be partial


def layernorm2d(x, weight, bias, *, eps=1e-6, block_hw=None):
    """LayerNorm2d forward: normalize over channel dim of an NCHW tensor.

    x:      (N, C, H, W)
    weight: (C,)   per-channel scale
    bias:   (C,)   per-channel shift
    """
    N, C, H, W = x.shape
    HW = H * W
    x3 = x.reshape(N, C, HW)

    if block_hw is None:
        block_hw = _pick_spatial_block(HW, C, itemsize=4)

    grid = (N, pl.cdiv(HW, block_hw))

    out = pl.pallas_call(
        functools.partial(_layernorm2d_kernel, eps=eps),
        out_shape=jax.ShapeDtypeStruct((N, C, HW), x.dtype),
        grid_spec=pltpu.PrefetchScalarGridSpec(
            num_scalar_prefetch=0,
            grid=grid,
            in_specs=[
                pl.BlockSpec((1, C, block_hw), lambda n, t: (n, 0, t)),
                pl.BlockSpec((1, C, 1), lambda n, t: (0, 0, 0)),
                pl.BlockSpec((1, C, 1), lambda n, t: (0, 0, 0)),
            ],
            out_specs=pl.BlockSpec((1, C, block_hw), lambda n, t: (n, 0, t)),
        ),
        compiler_params=pltpu.CompilerParams(
            dimension_semantics=("parallel", "parallel")),
    )(x3, weight.reshape(1, C, 1), bias.reshape(1, C, 1))

    return out.reshape(N, C, H, W)


# ---------------------------------------------------------------------------
# Pure-JAX reference (mirrors the PyTorch module exactly)
# ---------------------------------------------------------------------------
def layernorm2d_ref(x, weight, bias, *, eps=1e-6):
    u = jnp.mean(x, axis=1, keepdims=True)
    s = jnp.mean((x - u) ** 2, axis=1, keepdims=True)
    y = (x - u) / jnp.sqrt(s + eps)
    return weight[None, :, None, None] * y + bias[None, :, None, None]


# ---------------------------------------------------------------------------
if __name__ == "__main__":
    key = jax.random.PRNGKey(0)
    kx, kg, kb, kx2 = jax.random.split(key, 4)

    fwd = jax.jit(functools.partial(layernorm2d, eps=1e-6))

    # Case 1: small, lane-aligned shape (N=2, C=128, H=W=16).
    N, C, H, W = 2, 128, 16, 16
    x = jax.random.normal(kx, (N, C, H, W), jnp.float32)
    gamma = 1.0 + 0.1 * jax.random.normal(kg, (C,), jnp.float32)
    beta = 0.1 * jax.random.normal(kb, (C,), jnp.float32)

    y = jax.block_until_ready(fwd(x, gamma, beta))
    ref = layernorm2d_ref(x, gamma, beta, eps=1e-6)
    assert y.shape == (N, C, H, W)
    err = float(jnp.max(jnp.abs(y - ref)))
    assert err < 1e-4, f"case1 max err {err}"

    # Case 2: non-divisible spatial extent (exercises cdiv grid / partial block).
    N2, C2, H2, W2 = 2, 384, 37, 37
    x2 = jax.random.normal(kx2, (N2, C2, H2, W2), jnp.float32)
    gamma2 = jnp.ones((C2,), jnp.float32)
    beta2 = jnp.zeros((C2,), jnp.float32)

    y2 = jax.block_until_ready(
        jax.jit(functools.partial(layernorm2d, eps=1e-6))(x2, gamma2, beta2))
    ref2 = layernorm2d_ref(x2, gamma2, beta2, eps=1e-6)
    err2 = float(jnp.max(jnp.abs(y2 - ref2)))
    assert y2.shape == (N2, C2, H2, W2)
    assert err2 < 1e-4, f"case2 max err {err2}"

    print("KERNEL_OK")
</pallas_src>

<mosaic_0001>
module attributes {stable_mosaic.version = 11 : i64} {
  func.func @_layernorm2d_kernel(%arg0: i32, %arg1: i32, %arg2: memref<1x128x256xf32, #tpu.memory_space<vmem>>, %arg3: memref<1x128x1xf32, #tpu.memory_space<vmem>>, %arg4: memref<1x128x1xf32, #tpu.memory_space<vmem>>, %arg5: memref<1x128x256xf32, #tpu.memory_space<vmem>>) attributes {dimension_semantics = [#tpu.dimension_semantics<parallel>, #tpu.dimension_semantics<parallel>], iteration_bounds = array<i64: 2, 1>, scalar_prefetch = 0 : i64, scratch_operands = 0 : i64, tpu.core_type = #tpu.core_type<tc>, window_params = [{transform_indices = @transform_0, window_bounds = array<i64: 1, 128, 256>}, {pipeline_mode = #tpu.pipeline_mode<synchronous>, transform_indices = @transform_1, window_bounds = array<i64: 1, 128, 1>}, {pipeline_mode = #tpu.pipeline_mode<synchronous>, transform_indices = @transform_2, window_bounds = array<i64: 1, 128, 1>}, {transform_indices = @transform_3, window_bounds = array<i64: 1, 128, 256>}]} {
    %c0 = arith.constant 0 : index
    %c0_0 = arith.constant 0 : index
    %c0_1 = arith.constant 0 : index
    %0 = vector.load %arg2[%c0, %c0_0, %c0_1] : memref<1x128x256xf32, #tpu.memory_space<vmem>>, vector<1x128x256xf32>
    %cst = arith.constant dense<0.000000e+00> : vector<1x256xf32>
    %1 = vector.multi_reduction <add>, %0, %cst [1] : vector<1x128x256xf32> to vector<1x256xf32>
    %2 = vector.shape_cast %1 : vector<1x256xf32> to vector<1x1x256xf32>
    %cst_2 = arith.constant 1.280000e+02 : f32
    %3 = vector.broadcast %cst_2 : f32 to vector<1x1x256xf32>
    %4 = arith.divf %2, %3 : vector<1x1x256xf32>
    %5 = vector.broadcast %4 : vector<1x1x256xf32> to vector<1x128x256xf32>
    %6 = arith.subf %0, %5 : vector<1x128x256xf32>
    %7 = arith.mulf %6, %6 : vector<1x128x256xf32>
    %cst_3 = arith.constant dense<0.000000e+00> : vector<1x256xf32>
    %8 = vector.multi_reduction <add>, %7, %cst_3 [1] : vector<1x128x256xf32> to vector<1x256xf32>
    %9 = vector.shape_cast %8 : vector<1x256xf32> to vector<1x1x256xf32>
    %cst_4 = arith.constant 1.280000e+02 : f32
    %10 = vector.broadcast %cst_4 : f32 to vector<1x1x256xf32>
    %11 = arith.divf %9, %10 : vector<1x1x256xf32>
    %cst_5 = arith.constant 9.99999997E-7 : f32
    %12 = vector.broadcast %cst_5 : f32 to vector<1x1x256xf32>
    %13 = arith.addf %11, %12 : vector<1x1x256xf32>
    %14 = math.rsqrt %13 : vector<1x1x256xf32>
    %15 = vector.broadcast %14 : vector<1x1x256xf32> to vector<1x128x256xf32>
    %16 = arith.mulf %6, %15 : vector<1x128x256xf32>
    %c0_6 = arith.constant 0 : index
    %c0_7 = arith.constant 0 : index
    %c0_8 = arith.constant 0 : index
    %17 = vector.load %arg3[%c0_6, %c0_7, %c0_8] : memref<1x128x1xf32, #tpu.memory_space<vmem>>, vector<1x128x1xf32>
    %18 = vector.broadcast %17 : vector<1x128x1xf32> to vector<1x128x256xf32>
    %19 = arith.mulf %16, %18 : vector<1x128x256xf32>
    %c0_9 = arith.constant 0 : index
    %c0_10 = arith.constant 0 : index
    %c0_11 = arith.constant 0 : index
    %20 = vector.load %arg4[%c0_9, %c0_10, %c0_11] : memref<1x128x1xf32, #tpu.memory_space<vmem>>, vector<1x128x1xf32>
    %21 = vector.broadcast %20 : vector<1x128x1xf32> to vector<1x128x256xf32>
    %22 = arith.addf %19, %21 : vector<1x128x256xf32>
    %c0_12 = arith.constant 0 : index
    %c0_13 = arith.constant 0 : index
    %c0_14 = arith.constant 0 : index
    %23 = vector.load %arg5[%c0_12, %c0_13, %c0_14] : memref<1x128x256xf32, #tpu.memory_space<vmem>>, vector<1x128x256xf32>
    tpu.vector_store %arg5[%c0_12, %c0_13, %c0_14], %22 {strides = array<i32>} : memref<1x128x256xf32, #tpu.memory_space<vmem>>, vector<1x128x256xf32>,
    return
  }
  func.func @transform_0(%arg0: i32, %arg1: i32) -> (i32, i32, i32) {
    %c0_i32 = arith.constant 0 : i32
    %c0_i32_0 = arith.constant 0 : i32
    return %arg0, %c0_i32, %arg1 : i32, i32, i32
  }
  func.func @transform_1(%arg0: i32, %arg1: i32) -> (i32, i32, i32) {
    %c0_i32 = arith.constant 0 : i32
    %c0_i32_0 = arith.constant 0 : i32
    %c0_i32_1 = arith.constant 0 : i32
    %c0_i32_2 = arith.constant 0 : i32
    return %c0_i32, %c0_i32_0, %c0_i32_1 : i32, i32, i32
  }
  func.func @transform_2(%arg0: i32, %arg1: i32) -> (i32, i32, i32) {
    %c0_i32 = arith.constant 0 : i32
    %c0_i32_0 = arith.constant 0 : i32
    %c0_i32_1 = arith.constant 0 : i32
    %c0_i32_2 = arith.constant 0 : i32
    return %c0_i32, %c0_i32_0, %c0_i32_1 : i32, i32, i32
  }
  func.func @transform_3(%arg0: i32, %arg1: i32) -> (i32, i32, i32) {
    %c0_i32 = arith.constant 0 : i32
    %c0_i32_0 = arith.constant 0 : i32
    return %arg0, %c0_i32, %arg1 : i32, i32, i32
  }
}

</mosaic_0001>

<llo_original>
// kernel: layernorm2d.1
$region0: #{layernorm2d.1}
  #allocation0 [shape = 'u32[]', space=smem, size = 0x4, offset = 0x4, fixed_abs, tag = 'smem constant byte address 0x4 - core index']
  #allocation1 [shape = 'u32[144,128]{1,0:T(1,128)}', space=vmem, size = 0x12000, scoped, tag = 'internal scratch']
  %s0 = inlined_call_operand.vmem [shape: f32[2,128,256], index: 0, kind: input, shape index: {}]
  %s1 = inlined_call_operand.vmem [shape: f32[1,128,1], index: 1, kind: input, shape index: {}]
  %s2 = inlined_call_operand.vmem [shape: f32[1,128,1], index: 2, kind: input, shape index: {}]
  %s3 = inlined_call_operand.vmem [shape: f32[2,128,256], index: 3, kind: output, shape index: {}]
  %s4 = sld [smem:[#allocation0]]
  $region45: #{layernorm2d.1} parent=0
    _
  %s6 = ssub.s32 1, %s4
  %s7 = scalar_select 0, %s6, %s4
  loop: start=0, step=1, limit=4
  $region2: #{layernorm2d.1} parent=0 // loop_pre_header
    _
  $region3: #{layernorm2d.1} parent=0 // loop_header
    %s9 = sphi 0, %s13
    %p10 = scmp.ge.s32.totalorder %s9, 4
    %s16 = sphi 0, %s28
    %s17 = sphi 0, %s24
    %s18 = sphi 0, %s16
    %s19 = sphi 0, %s17
    %s20 = sphi 0, %s18
    %s21 = sphi 0, %s19
    %s33 = sphi 0, %s35
    %s36 = sphi 0, %s33
    %s37 = sphi 0, %s36
    %s53 = sphi 0, %s37
    %s57 = sphi 0, %s57
    %s59 = sphi 0, %s57
    %s60 = sphi 0, %s59
    %s74 = sphi 0, %s60
    %s78 = sphi 0, %s78
    %s80 = sphi 0, %s78
    %s81 = sphi 0, %s80
    %s95 = sphi 0, %s81
    %s103 = sphi 0, %s105
    %s106 = sphi 0, %s103
    %s107 = sphi 0, %s106
    %s123 = sphi 0, %s107
  $region4: #{layernorm2d.1} parent=0 // loop_header_branch
    %12 = sbr.rel (%p10) target = $region8
  $region5: #{layernorm2d.1} parent=0 // loop_body
    %s14 = ssub.s32 %s9, 1
    %s15 = ssub.s32 %s9, 2
    %s22 = sadd.s32 1, %s17
    %p23 = scmp.ge.s32.totalorder %s22, 1
    %s24 = scalar_select %p23, 0, %s22
    %s25 = sadd.s32 1, %s16
    %s26 = scalar_select %p23, %s25, %s16
    %p27 = scmp.ge.s32.totalorder %s26, 2
    %s28 = scalar_select %p27, 0, %s26
    %s29 = ssub.s32 %s16, %s28
    %s30 = ssub.s32 %s17, %s24
    %s31 = sor.u32 %s29, %s30
    %p32 = scmp.eq.s32.totalorder %s31, 0
    %s34 = sadd.s32 %s33, 1
    %s35 = scalar_select %p32, %s33, %s34
    %p38 = pneg %p32
    %p39 = scmp.eq.s32.totalorder %s9, 1
    %p40 = por %p38, %p39
    %p41 = scmp.ne.s32.totalorder %s33, %s36
    %p42 = scmp.eq.s32.totalorder %s9, 0
    %p43 = por %p41, %p42
    %p44 = scmp.ne.s32.totalorder %s33, %s36
    %p45 = scmp.eq.s32.totalorder %s14, 1
    %p46 = por %p44, %p45
    %p47 = scmp.ne.s32.totalorder %s36, %s37
    %p48 = scmp.eq.s32.totalorder %s14, 0
    %p49 = por %p47, %p48
    %p50 = scmp.ne.s32.totalorder %s36, %s37
    %p51 = scmp.eq.s32.totalorder %s15, 1
    %p52 = por %p50, %p51
    %p54 = scmp.ne.s32.totalorder %s37, %s53
    %p55 = scmp.eq.s32.totalorder %s15, 0
    %p56 = por %p54, %p55
    %s58 = sadd.s32 %s57, 1
    %p61 = scmp.eq.s32.totalorder %s9, 1
    %p62 = scmp.ne.s32.totalorder %s57, %s59
    %p63 = scmp.eq.s32.totalorder %s9, 0
    %p64 = por %p62, %p63
    %p65 = scmp.ne.s32.totalorder %s57, %s59
    %p66 = scmp.eq.s32.totalorder %s14, 1
    %p67 = por %p65, %p66
    %p68 = scmp.ne.s32.totalorder %s59, %s60
    %p69 = scmp.eq.s32.totalorder %s14, 0
    %p70 = por %p68, %p69
    %p71 = scmp.ne.s32.totalorder %s59, %s60
    %p72 = scmp.eq.s32.totalorder %s15, 1
    %p73 = por %p71, %p72
    %p75 = scmp.ne.s32.totalorder %s60, %s74
    %p76 = scmp.eq.s32.totalorder %s15, 0
    %p77 = por %p75, %p76
    %s79 = sadd.s32 %s78, 1
    %p82 = scmp.eq.s32.totalorder %s9, 1
    %p83 = scmp.ne.s32.totalorder %s78, %s80
    %p84 = scmp.eq.s32.totalorder %s9, 0
    %p85 = por %p83, %p84
    %p86 = scmp.ne.s32.totalorder %s78, %s80
    %p87 = scmp.eq.s32.totalorder %s14, 1
    %p88 = por %p86, %p87
    %p89 = scmp.ne.s32.totalorder %s80, %s81
    %p90 = scmp.eq.s32.totalorder %s14, 0
    %p91 = por %p89, %p90
    %p92 = scmp.ne.s32.totalorder %s80, %s81
    %p93 = scmp.eq.s32.totalorder %s15, 1
    %p94 = por %p92, %p93
    %p96 = scmp.ne.s32.totalorder %s81, %s95
    %p97 = scmp.eq.s32.totalorder %s15, 0
    %p98 = por %p96, %p97
    %s99 = ssub.s32 %s16, %s28
    %s100 = ssub.s32 %s17, %s24
    %s101 = sor.u32 %s99, %s100
    %p102 = scmp.eq.s32.totalorder %s101, 0
    %s104 = sadd.s32 %s103, 1
    %s105 = scalar_select %p102, %s103, %s104
    %p108 = pneg %p102
    %p109 = scmp.eq.s32.totalorder %s9, 1
    %p110 = por %p108, %p109
    %p111 = scmp.ne.s32.totalorder %s103, %s106
    %p112 = scmp.eq.s32.totalorder %s9, 0
    %p113 = por %p111, %p112
    %p114 = scmp.ne.s32.totalorder %s103, %s106
    %p115 = scmp.eq.s32.totalorder %s14, 1
    %p116 = por %p114, %p115
    %p117 = scmp.ne.s32.totalorder %s106, %s107
    %p118 = scmp.eq.s32.totalorder %s14, 0
    %p119 = por %p117, %p118
    %p120 = scmp.ne.s32.totalorder %s106, %s107
    %p121 = scmp.eq.s32.totalorder %s15, 1
    %p122 = por %p120, %p121
    %p124 = scmp.ne.s32.totalorder %s107, %s123
    %p125 = scmp.eq.s32.totalorder %s15, 0
    %p126 = por %p124, %p125
    %p127 = scmp.le.s32.totalorder 1, %s9
    %p128 = scmp.lt.s32.totalorder %s9, 3
    %p129 = pnand %p127, %p128
    %p130 = pneg %p129
    // Predicated region
    $region9: #{layernorm2d.1} parent=5 // pred_check
      _
    $region10: #{layernorm2d.1} parent=5 // pred_check_branch
      %132 = sbr.rel (%p129) target = $region12
    $region11: #{layernorm2d.1} parent=5 // pred_region
      %s133 = ssub.s32 %s9, 1
      // Predicated region
      $region13: #{layernorm2d.1} parent=11 // pred_check
        %p134 = pneg %p70
      $region14: #{layernorm2d.1} parent=11 // pred_check_branch
        %136 = sbr.rel (%p134) target = $region16
      $region15: #{layernorm2d.1} parent=11 // pred_region
        _
      $region16: #{layernorm2d.1} parent=11 // pred_fallthru
        _
      // Predicated region
      $region17: #{layernorm2d.1} parent=11 // pred_check
        %p137 = pneg %p91
      $region18: #{layernorm2d.1} parent=11 // pred_check_branch
        %139 = sbr.rel (%p137) target = $region20
      $region19: #{layernorm2d.1} parent=11 // pred_region
        _
      $region20: #{layernorm2d.1} parent=11 // pred_fallthru
        _
    $region12: #{layernorm2d.1} parent=5 // pred_fallthru
      _
    %p140 = scmp.lt.s32.totalorder %s9, 2
    // Predicated region
    $region21: #{layernorm2d.1} parent=5 // pred_check
      %p141 = pneg %p140
    $region22: #{layernorm2d.1} parent=5 // pred_check_branch
      %143 = sbr.rel (%p141) target = $region24
    $region23: #{layernorm2d.1} parent=5 // pred_region
      // Predicated region
      $region25: #{layernorm2d.1} parent=23 // pred_check
        %p144 = pneg %p43
      $region26: #{layernorm2d.1} parent=23 // pred_check_branch
        %146 = sbr.rel (%p144) target = $region28
      $region27: #{layernorm2d.1} parent=23 // pred_region
        %s147 = smul.u32 2, %s17
        %p148 = scmp.lt.s32.totalorder %s16, 1
        %s149 = scalar_select %p148, %s16, 1
        %p150 = scmp.lt.s32.totalorder %s147, 1
        %s151 = scalar_select %p150, %s147, 1
        %s152 = smul.addr %s149, 32
        %s153 = sadd.s32 %s151, %s152
        %s154 = smul.addr %s153, 8
        %s155 = scalar_lea.vmem %s0, %s154
        %s156 = smul.u32 2, %s17
      $region28: #{layernorm2d.1} parent=23 // pred_fallthru
        _
    $region24: #{layernorm2d.1} parent=5 // pred_fallthru
      _
    %p157 = scmp.le.s32.totalorder 1, %s9
    %p158 = scmp.lt.s32.totalorder %s9, 3
    %p159 = pnand %p157, %p158
    %p160 = pneg %p159
    // Predicated region
    $region29: #{layernorm2d.1} parent=5 // pred_check
      _
    $region30: #{layernorm2d.1} parent=5 // pred_check_branch
      %162 = sbr.rel (%p159) target = $region32
    $region31: #{layernorm2d.1} parent=5 // pred_region
      %s163 = ssub.s32 %s9, 1
      %s164 = smul.u32 2, %s19
      %p165 = scmp.lt.s32.totalorder %s18, 1
      %s166 = scalar_select %p165, %s18, 1
      %p167 = scmp.lt.s32.totalorder %s164, 1
      %s168 = scalar_select %p167, %s164, 1
      %s169 = smul.addr %s166, 32
      %s170 = sadd.s32 %s168, %s169
      %s171 = smul.addr %s170, 8
      %s172 = scalar_lea.vmem %s0, %s171
      %p173 = pneg %p49
      %p174 = pneg %p46
      %p175 = pneg %p70
      %p176 = pneg %p67
      %p177 = pneg %p91
      %p178 = pneg %p88
      %p179 = pneg %p119
      %p180 = pneg %p116
      %s181 = smul.u32 2, %s19
      %p182 = scmp.lt.s32.totalorder %s18, 1
      %s183 = scalar_select %p182, %s18, 1
      %p184 = scmp.lt.s32.totalorder %s181, 1
      %s185 = scalar_select %p184, %s181, 1
      %s186 = smul.addr %s183, 32
      %s187 = sadd.s32 %s185, %s186
      %s188 = smul.addr %s187, 8
      %s189 = scalar_lea.vmem %s3, %s188
      %s190 = smul.u32 2, %s19
      %p191 = scmp.lt.s32.totalorder %s18, 1
      %s192 = scalar_select %p191, %s18, 1
      %p193 = scmp.lt.s32.totalorder %s190, 1
      %s194 = scalar_select %p193, %s190, 1
      %s195 = smul.addr %s192, 32
      %s196 = sadd.s32 %s194, %s195
      %s197 = smul.addr %s196, 8
      %s198 = scalar_lea.vmem %s0, %s197
      %s199 = smul.u32 2, %s19
      %s200 = smul.u32 2, %s19
      %p201 = scmp.lt.s32.totalorder %s18, 1
      %s202 = scalar_select %p201, %s18, 1
      %p203 = scmp.lt.s32.totalorder %s200, 1
      %s204 = scalar_select %p203, %s200, 1
      %s205 = smul.addr %s202, 32
      %s206 = sadd.s32 %s204, %s205
      %s207 = smul.addr %s206, 8
      %s208 = scalar_lea.vmem %s3, %s207
      %s209 = smul.u32 2, %s19
      %v210 = vld [vmem:[%s198] sm:$0xff]
      %v211 = vld [vmem:[%s198 + $0x8] sm:$0xff]
      %v212 = vld [vmem:[%s198 + $0x10] sm:$0xff]
      %v213 = vld [vmem:[%s198 + $0x18] sm:$0xff]
      %v214 = vld [vmem:[%s198 + $0x20] sm:$0xff]
      %v215 = vld [vmem:[%s198 + $0x28] sm:$0xff]
      %v216 = vld [vmem:[%s198 + $0x30] sm:$0xff]
      %v217 = vld [vmem:[%s198 + $0x38] sm:$0xff]
      %v218 = vld [vmem:[%s198 + $0x40] sm:$0xff]
      %v219 = vld [vmem:[%s198 + $0x48] sm:$0xff]
      %v220 = vld [vmem:[%s198 + $0x50] sm:$0xff]
      %v221 = vld [vmem:[%s198 + $0x58] sm:$0xff]
      %v222 = vld [vmem:[%s198 + $0x60] sm:$0xff]
      %v223 = vld [vmem:[%s198 + $0x68] sm:$0xff]
      %v224 = vld [vmem:[%s198 + $0x70] sm:$0xff]
      %v225 = vld [vmem:[%s198 + $0x78] sm:$0xff]
      %v226 = vld [vmem:[%s198 + $0x80] sm:$0xff]
      %v227 = vld [vmem:[%s198 + $0x88] sm:$0xff]
      %v228 = vld [vmem:[%s198 + $0x90] sm:$0xff]
      %v229 = vld [vmem:[%s198 + $0x98] sm:$0xff]
      %v230 = vld [vmem:[%s198 + $0xa0] sm:$0xff]
      %v231 = vld [vmem:[%s198 + $0xa8] sm:$0xff]
      %v232 = vld [vmem:[%s198 + $0xb0] sm:$0xff]
      %v233 = vld [vmem:[%s198 + $0xb8] sm:$0xff]
      %v234 = vld [vmem:[%s198 + $0xc0] sm:$0xff]
      %v235 = vld [vmem:[%s198 + $0xc8] sm:$0xff]
      %v236 = vld [vmem:[%s198 + $0xd0] sm:$0xff]
      %v237 = vld [vmem:[%s198 + $0xd8] sm:$0xff]
      %v238 = vld [vmem:[%s198 + $0xe0] sm:$0xff]
      %v239 = vld [vmem:[%s198 + $0xe8] sm:$0xff]
      %v240 = vld [vmem:[%s198 + $0xf0] sm:$0xff]
      %v241 = vld [vmem:[%s198 + $0xf8] sm:$0xff]
      %v242 = vadd.f32 %v210, %v212
      %v243 = vadd.f32 %v242, %v214
      %v244 = vadd.f32 %v243, %v216
      %v245 = vadd.f32 %v244, %v218
      %v246 = vadd.f32 %v245, %v220
      %v247 = vadd.f32 %v246, %v222
      %v248 = vadd.f32 %v247, %v224
      %v249 = vadd.f32 %v248, %v226
      %v250 = vadd.f32 %v249, %v228
      %v251 = vadd.f32 %v250, %v230
      %v252 = vadd.f32 %v251, %v232
      %v253 = vadd.f32 %v252, %v234
      %v254 = vadd.f32 %v253, %v236
      %v255 = vadd.f32 %v254, %v238
      %v256 = vadd.f32 %v255, %v240
      %v257 = vrot.slane %v256, 4
      %v258 = vadd.f32 %v256, %v257
      %v259 = vrot.slane %v258, 2
      %v260 = vadd.f32 %v258, %v259
      %v261 = vrot.slane %v260, 1
      %v262 = vadd.f32 %v260, %v261
      %v263 = vadd.f32 %v211, %v213
      %v264 = vadd.f32 %v263, %v215
      %v265 = vadd.f32 %v264, %v217
      %v266 = vadd.f32 %v265, %v219
      %v267 = vadd.f32 %v266, %v221
      %v268 = vadd.f32 %v267, %v223
      %v269 = vadd.f32 %v268, %v225
      %v270 = vadd.f32 %v269, %v227
      %v271 = vadd.f32 %v270, %v229
      %v272 = vadd.f32 %v271, %v231
      %v273 = vadd.f32 %v272, %v233
      %v274 = vadd.f32 %v273, %v235
      %v275 = vadd.f32 %v274, %v237
      %v276 = vadd.f32 %v275, %v239
      %v277 = vadd.f32 %v276, %v241
      %v278 = vrot.slane %v277, 4
      %v279 = vadd.f32 %v277, %v278
      %v280 = vrot.slane %v279, 2
      %v281 = vadd.f32 %v279, %v280
      %v282 = vrot.slane %v281, 1
      %v283 = vadd.f32 %v281, %v282
      %v284 = vrcp.pop 128.0
      %v285 = vmul.f32 %v262, %v284
      %v286 = vmul.f32 %v283, %v284
      %v287 = vsub.f32 %v210, %v285
      %v288 = vsub.f32 %v211, %v286
      %v289 = vsub.f32 %v212, %v285
      %v290 = vsub.f32 %v213, %v286
      %v291 = vsub.f32 %v214, %v285
      %v292 = vsub.f32 %v215, %v286
      %v293 = vsub.f32 %v216, %v285
      %v294 = vsub.f32 %v217, %v286
      %v295 = vsub.f32 %v218, %v285
      %v296 = vsub.f32 %v219, %v286
      %v297 = vsub.f32 %v220, %v285
      %v298 = vsub.f32 %v221, %v286
      %v299 = vsub.f32 %v222, %v285
      %v300 = vsub.f32 %v223, %v286
      %v301 = vsub.f32 %v224, %v285
      %v302 = vsub.f32 %v225, %v286
      %v303 = vsub.f32 %v226, %v285
      %v304 = vsub.f32 %v227, %v286
      %v305 = vsub.f32 %v228, %v285
      %v306 = vsub.f32 %v229, %v286
      %v307 = vsub.f32 %v230, %v285
      %v308 = vsub.f32 %v231, %v286
      %v309 = vsub.f32 %v232, %v285
      %v310 = vsub.f32 %v233, %v286
      %v311 = vsub.f32 %v234, %v285
      %v312 = vsub.f32 %v235, %v286
      %v313 = vsub.f32 %v236, %v285
      %v314 = vsub.f32 %v237, %v286
      %v315 = vsub.f32 %v238, %v285
      %v316 = vsub.f32 %v239, %v286
      %v317 = vsub.f32 %v240, %v285
      %v318 = vsub.f32 %v241, %v286
      %v319 = vmul.f32 %v287, %v287
      %v320 = vmul.f32 %v288, %v288
      %v321 = vmul.f32 %v289, %v289
      %v322 = vmul.f32 %v290, %v290
      %v323 = vmul.f32 %v291, %v291
      %v324 = vmul.f32 %v292, %v292
      %v325 = vmul.f32 %v293, %v293
      %v326 = vmul.f32 %v294, %v294
      %v327 = vmul.f32 %v295, %v295
      %v328 = vmul.f32 %v296, %v296
      %v329 = vmul.f32 %v297, %v297
      %v330 = vmul.f32 %v298, %v298
      %v331 = vmul.f32 %v299, %v299
      %v332 = vmul.f32 %v300, %v300
      %v333 = vmul.f32 %v301, %v301
      %v334 = vmul.f32 %v302, %v302
      %v335 = vmul.f32 %v303, %v303
      %v336 = vmul.f32 %v304, %v304
      %v337 = vmul.f32 %v305, %v305
      %v338 = vmul.f32 %v306, %v306
      %v339 = vmul.f32 %v307, %v307
      %v340 = vmul.f32 %v308, %v308
      %v341 = vmul.f32 %v309, %v309
      %v342 = vmul.f32 %v310, %v310
      %v343 = vmul.f32 %v311, %v311
      %v344 = vmul.f32 %v312, %v312
      %v345 = vmul.f32 %v313, %v313
      %v346 = vmul.f32 %v314, %v314
      %v347 = vmul.f32 %v315, %v315
      %v348 = vmul.f32 %v316, %v316
      %v349 = vmul.f32 %v317, %v317
      %v350 = vmul.f32 %v318, %v318
      %v351 = vadd.f32 %v319, %v321
      %v352 = vadd.f32 %v351, %v323
      %v353 = vadd.f32 %v352, %v325
      %v354 = vadd.f32 %v353, %v327
      %v355 = vadd.f32 %v354, %v329
      %v356 = vadd.f32 %v355, %v331
      %v357 = vadd.f32 %v356, %v333
      %v358 = vadd.f32 %v357, %v335
      %v359 = vadd.f32 %v358, %v337
      %v360 = vadd.f32 %v359, %v339
      %v361 = vadd.f32 %v360, %v341
      %v362 = vadd.f32 %v361, %v343
      %v363 = vadd.f32 %v362, %v345
      %v364 = vadd.f32 %v363, %v347
      %v365 = vadd.f32 %v364, %v349
      %v366 = vrot.slane %v365, 4
      %v367 = vadd.f32 %v365, %v366
      %v368 = vrot.slane %v367, 2
      %v369 = vadd.f32 %v367, %v368
      %v370 = vrot.slane %v369, 1
      %v371 = vadd.f32 %v369, %v370
      %v372 = vadd.f32 %v320, %v322
      %v373 = vadd.f32 %v372, %v324
      %v374 = vadd.f32 %v373, %v326
      %v375 = vadd.f32 %v374, %v328
      %v376 = vadd.f32 %v375, %v330
      %v377 = vadd.f32 %v376, %v332
      %v378 = vadd.f32 %v377, %v334
      %v379 = vadd.f32 %v378, %v336
      %v380 = vadd.f32 %v379, %v338
      %v381 = vadd.f32 %v380, %v340
      %v382 = vadd.f32 %v381, %v342
      %v383 = vadd.f32 %v382, %v344
      %v384 = vadd.f32 %v383, %v346
      %v385 = vadd.f32 %v384, %v348
      %v386 = vadd.f32 %v385, %v350
      %v387 = vrot.slane %v386, 4
      %v388 = vadd.f32 %v386, %v387
      %v389 = vrot.slane %v388, 2
      %v390 = vadd.f32 %v388, %v389
      %v391 = vrot.slane %v390, 1
      %v392 = vadd.f32 %v390, %v391
      %v393 = vmul.f32 %v371, %v284
      %v394 = vmul.f32 %v392, %v284
      %v395 = vadd.f32 %v393, 1e-06
      %v396 = vadd.f32 %v394, 1e-06
      %v397 = vrsqrt.pop %v395
      %v398 = vrsqrt.pop %v396
      %v399 = vmul.f32 %v287, %v397
      %v400 = vmul.f32 %v288, %v398
      %v401 = vmul.f32 %v289, %v397
      %v402 = vmul.f32 %v290, %v398
      %v403 = vmul.f32 %v291, %v397
      %v404 = vmul.f32 %v292, %v398
      %v405 = vmul.f32 %v293, %v397
      %v406 = vmul.f32 %v294, %v398
      %v407 = vmul.f32 %v295, %v397
      %v408 = vmul.f32 %v296, %v398
      %v409 = vmul.f32 %v297, %v397
      %v410 = vmul.f32 %v298, %v398
      %v411 = vmul.f32 %v299, %v397
      %v412 = vmul.f32 %v300, %v398
      %v413 = vmul.f32 %v301, %v397
      %v414 = vmul.f32 %v302, %v398
      %v415 = vmul.f32 %v303, %v397
      %v416 = vmul.f32 %v304, %v398
      %v417 = vmul.f32 %v305, %v397
      %v418 = vmul.f32 %v306, %v398
      %v419 = vmul.f32 %v307, %v397
      %v420 = vmul.f32 %v308, %v398
      %v421 = vmul.f32 %v309, %v397
      %v422 = vmul.f32 %v310, %v398
      %v423 = vmul.f32 %v311, %v397
      %v424 = vmul.f32 %v312, %v398
      %v425 = vmul.f32 %v313, %v397
      %v426 = vmul.f32 %v314, %v398
      %v427 = vmul.f32 %v315, %v397
      %v428 = vmul.f32 %v316, %v398
      %v429 = vmul.f32 %v317, %v397
      %v430 = vmul.f32 %v318, %v398
      %v431 = vld [vmem:[%s1] sm:$0xff]
      %v432 = vld [vmem:[%s1 + $0x8] sm:$0xff]
      %v433 = vld [vmem:[%s1 + $0x10] sm:$0xff]
      %v434 = vld [vmem:[%s1 + $0x18] sm:$0xff]
      %v435 = vld [vmem:[%s1 + $0x20] sm:$0xff]
      %v436 = vld [vmem:[%s1 + $0x28] sm:$0xff]
      %v437 = vld [vmem:[%s1 + $0x30] sm:$0xff]
      %v438 = vld [vmem:[%s1 + $0x38] sm:$0xff]
      %v439 = vld [vmem:[%s1 + $0x40] sm:$0xff]
      %v440 = vld [vmem:[%s1 + $0x48] sm:$0xff]
      %v441 = vld [vmem:[%s1 + $0x50] sm:$0xff]
      %v442 = vld [vmem:[%s1 + $0x58] sm:$0xff]
      %v443 = vld [vmem:[%s1 + $0x60] sm:$0xff]
      %v444 = vld [vmem:[%s1 + $0x68] sm:$0xff]
      %v445 = vld [vmem:[%s1 + $0x70] sm:$0xff]
      %v446 = vld [vmem:[%s1 + $0x78] sm:$0xff]
      %448 = vset.pattern.permute.xlu0 0
      %449 = vperm.xlu0 %448, %v431
      %v450 = vpop.permute.xlu0 %449
      %453 = vset.pattern.permute.xlu0 0
      %454 = vperm.xlu0 %453, %v432
      %v455 = vpop.permute.xlu0 %454
      %458 = vset.pattern.permute.xlu0 0
      %459 = vperm.xlu0 %458, %v433
      %v460 = vpop.permute.xlu0 %459
      %463 = vset.pattern.permute.xlu0 0
      %464 = vperm.xlu0 %463, %v434
      %v465 = vpop.permute.xlu0 %464
      %468 = vset.pattern.permute.xlu0 0
      %469 = vperm.xlu0 %468, %v435
      %v470 = vpop.permute.xlu0 %469
      %473 = vset.pattern.permute.xlu0 0
      %474 = vperm.xlu0 %473, %v436
      %v475 = vpop.permute.xlu0 %474
      %478 = vset.pattern.permute.xlu0 0
      %479 = vperm.xlu0 %478, %v437
      %v480 = vpop.permute.xlu0 %479
      %483 = vset.pattern.permute.xlu0 0
      %484 = vperm.xlu0 %483, %v438
      %v485 = vpop.permute.xlu0 %484
      %488 = vset.pattern.permute.xlu0 0
      %489 = vperm.xlu0 %488, %v439
      %v490 = vpop.permute.xlu0 %489
      %493 = vset.pattern.permute.xlu0 0
      %494 = vperm.xlu0 %493, %v440
      %v495 = vpop.permute.xlu0 %494
      %498 = vset.pattern.permute.xlu0 0
      %499 = vperm.xlu0 %498, %v441
      %v500 = vpop.permute.xlu0 %499
      %503 = vset.pattern.permute.xlu0 0
      %504 = vperm.xlu0 %503, %v442
      %v505 = vpop.permute.xlu0 %504
      %508 = vset.pattern.permute.xlu0 0
      %509 = vperm.xlu0 %508, %v443
      %v510 = vpop.permute.xlu0 %509
      %513 = vset.pattern.permute.xlu0 0
      %514 = vperm.xlu0 %513, %v444
      %v515 = vpop.permute.xlu0 %514
      %518 = vset.pattern.permute.xlu0 0
      %519 = vperm.xlu0 %518, %v445
      %v520 = vpop.permute.xlu0 %519
      %523 = vset.pattern.permute.xlu0 0
      %524 = vperm.xlu0 %523, %v446
      %v525 = vpop.permute.xlu0 %524
      %v527 = vmul.f32 %v399, %v450
      %v528 = vmul.f32 %v400, %v450
      %v529 = vmul.f32 %v401, %v455
      %v530 = vmul.f32 %v402, %v455
      %v531 = vmul.f32 %v403, %v460
      %v532 = vmul.f32 %v404, %v460
      %v533 = vmul.f32 %v405, %v465
      %v534 = vmul.f32 %v406, %v465
      %v535 = vmul.f32 %v407, %v470
      %v536 = vmul.f32 %v408, %v470
      %v537 = vmul.f32 %v409, %v475
      %v538 = vmul.f32 %v410, %v475
      %v539 = vmul.f32 %v411, %v480
      %v540 = vmul.f32 %v412, %v480
      %v541 = vmul.f32 %v413, %v485
      %v542 = vmul.f32 %v414, %v485
      %v543 = vmul.f32 %v415, %v490
      %v544 = vmul.f32 %v416, %v490
      %v545 = vmul.f32 %v417, %v495
      %v546 = vmul.f32 %v418, %v495
      %v547 = vmul.f32 %v419, %v500
      %v548 = vmul.f32 %v420, %v500
      %v549 = vmul.f32 %v421, %v505
      %v550 = vmul.f32 %v422, %v505
      %v551 = vmul.f32 %v423, %v510
      %v552 = vmul.f32 %v424, %v510
      %v553 = vmul.f32 %v425, %v515
      %v554 = vmul.f32 %v426, %v515
      %v555 = vmul.f32 %v427, %v520
      %v556 = vmul.f32 %v428, %v520
      %v557 = vmul.f32 %v429, %v525
      %v558 = vmul.f32 %v430, %v525
      %v559 = vld [vmem:[%s2] sm:$0xff]
      %v560 = vld [vmem:[%s2 + $0x8] sm:$0xff]
      %v561 = vld [vmem:[%s2 + $0x10] sm:$0xff]
      %v562 = vld [vmem:[%s2 + $0x18] sm:$0xff]
      %v563 = vld [vmem:[%s2 + $0x20] sm:$0xff]
      %v564 = vld [vmem:[%s2 + $0x28] sm:$0xff]
      %v565 = vld [vmem:[%s2 + $0x30] sm:$0xff]
      %v566 = vld [vmem:[%s2 + $0x38] sm:$0xff]
      %v567 = vld [vmem:[%s2 + $0x40] sm:$0xff]
      %v568 = vld [vmem:[%s2 + $0x48] sm:$0xff]
      %v569 = vld [vmem:[%s2 + $0x50] sm:$0xff]
      %v570 = vld [vmem:[%s2 + $0x58] sm:$0xff]
      %v571 = vld [vmem:[%s2 + $0x60] sm:$0xff]
      %v572 = vld [vmem:[%s2 + $0x68] sm:$0xff]
      %v573 = vld [vmem:[%s2 + $0x70] sm:$0xff]
      %v574 = vld [vmem:[%s2 + $0x78] sm:$0xff]
      %576 = vset.pattern.permute.xlu0 0
      %577 = vperm.xlu0 %576, %v559
      %v578 = vpop.permute.xlu0 %577
      %581 = vset.pattern.permute.xlu0 0
      %582 = vperm.xlu0 %581, %v560
      %v583 = vpop.permute.xlu0 %582
      %586 = vset.pattern.permute.xlu0 0
      %587 = vperm.xlu0 %586, %v561
      %v588 = vpop.permute.xlu0 %587
      %591 = vset.pattern.permute.xlu0 0
      %592 = vperm.xlu0 %591, %v562
      %v593 = vpop.permute.xlu0 %592
      %596 = vset.pattern.permute.xlu0 0
      %597 = vperm.xlu0 %596, %v563
      %v598 = vpop.permute.xlu0 %597
      %601 = vset.pattern.permute.xlu0 0
      %602 = vperm.xlu0 %601, %v564
      %v603 = vpop.permute.xlu0 %602
      %606 = vset.pattern.permute.xlu0 0
      %607 = vperm.xlu0 %606, %v565
      %v608 = vpop.permute.xlu0 %607
      %611 = vset.pattern.permute.xlu0 0
      %612 = vperm.xlu0 %611, %v566
      %v613 = vpop.permute.xlu0 %612
      %616 = vset.pattern.permute.xlu0 0
      %617 = vperm.xlu0 %616, %v567
      %v618 = vpop.permute.xlu0 %617
      %621 = vset.pattern.permute.xlu0 0
      %622 = vperm.xlu0 %621, %v568
      %v623 = vpop.permute.xlu0 %622
      %626 = vset.pattern.permute.xlu0 0
      %627 = vperm.xlu0 %626, %v569
      %v628 = vpop.permute.xlu0 %627
      %631 = vset.pattern.permute.xlu0 0
      %632 = vperm.xlu0 %631, %v570
      %v633 = vpop.permute.xlu0 %632
      %636 = vset.pattern.permute.xlu0 0
      %637 = vperm.xlu0 %636, %v571
      %v638 = vpop.permute.xlu0 %637
      %641 = vset.pattern.permute.xlu0 0
      %642 = vperm.xlu0 %641, %v572
      %v643 = vpop.permute.xlu0 %642
      %646 = vset.pattern.permute.xlu0 0
      %647 = vperm.xlu0 %646, %v573
      %v648 = vpop.permute.xlu0 %647
      %651 = vset.pattern.permute.xlu0 0
      %652 = vperm.xlu0 %651, %v574
      %v653 = vpop.permute.xlu0 %652
      %v655 = vadd.f32 %v527, %v578
      %v656 = vadd.f32 %v528, %v578
      %v657 = vadd.f32 %v529, %v583
      %v658 = vadd.f32 %v530, %v583
      %v659 = vadd.f32 %v531, %v588
      %v660 = vadd.f32 %v532, %v588
      %v661 = vadd.f32 %v533, %v593
      %v662 = vadd.f32 %v534, %v593
      %v663 = vadd.f32 %v535, %v598
      %v664 = vadd.f32 %v536, %v598
      %v665 = vadd.f32 %v537, %v603
      %v666 = vadd.f32 %v538, %v603
      %v667 = vadd.f32 %v539, %v608
      %v668 = vadd.f32 %v540, %v608
      %v669 = vadd.f32 %v541, %v613
      %v670 = vadd.f32 %v542, %v613
      %v671 = vadd.f32 %v543, %v618
      %v672 = vadd.f32 %v544, %v618
      %v673 = vadd.f32 %v545, %v623
      %v674 = vadd.f32 %v546, %v623
      %v675 = vadd.f32 %v547, %v628
      %v676 = vadd.f32 %v548, %v628
      %v677 = vadd.f32 %v549, %v633
      %v678 = vadd.f32 %v550, %v633
      %v679 = vadd.f32 %v551, %v638
      %v680 = vadd.f32 %v552, %v638
      %v681 = vadd.f32 %v553, %v643
      %v682 = vadd.f32 %v554, %v643
      %v683 = vadd.f32 %v555, %v648
      %v684 = vadd.f32 %v556, %v648
      %v685 = vadd.f32 %v557, %v653
      %v686 = vadd.f32 %v558, %v653
      %687 = vst [vmem:[%s208] sm:$0xff] %v655
      %688 = vst [vmem:[%s208 + $0x8] sm:$0xff] %v656
      %689 = vst [vmem:[%s208 + $0x10] sm:$0xff] %v657
      %690 = vst [vmem:[%s208 + $0x18] sm:$0xff] %v658
      %691 = vst [vmem:[%s208 + $0x20] sm:$0xff] %v659
      %692 = vst [vmem:[%s208 + $0x28] sm:$0xff] %v660
      %693 = vst [vmem:[%s208 + $0x30] sm:$0xff] %v661
      %694 = vst [vmem:[%s208 + $0x38] sm:$0xff] %v662
      %695 = vst [vmem:[%s208 + $0x40] sm:$0xff] %v663
      %696 = vst [vmem:[%s208 + $0x48] sm:$0xff] %v664
      %697 = vst [vmem:[%s208 + $0x50] sm:$0xff] %v665
      %698 = vst [vmem:[%s208 + $0x58] sm:$0xff] %v666
      %699 = vst [vmem:[%s208 + $0x60] sm:$0xff] %v667
      %700 = vst [vmem:[%s208 + $0x68] sm:$0xff] %v668
      %701 = vst [vmem:[%s208 + $0x70] sm:$0xff] %v669
      %702 = vst [vmem:[%s208 + $0x78] sm:$0xff] %v670
      %703 = vst [vmem:[%s208 + $0x80] sm:$0xff] %v671
      %704 = vst [vmem:[%s208 + $0x88] sm:$0xff] %v672
      %705 = vst [vmem:[%s208 + $0x90] sm:$0xff] %v673
      %706 = vst [vmem:[%s208 + $0x98] sm:$0xff] %v674
      %707 = vst [vmem:[%s208 + $0xa0] sm:$0xff] %v675
      %708 = vst [vmem:[%s208 + $0xa8] sm:$0xff] %v676
      %709 = vst [vmem:[%s208 + $0xb0] sm:$0xff] %v677
      %710 = vst [vmem:[%s208 + $0xb8] sm:$0xff] %v678
      %711 = vst [vmem:[%s208 + $0xc0] sm:$0xff] %v679
      %712 = vst [vmem:[%s208 + $0xc8] sm:$0xff] %v680
      %713 = vst [vmem:[%s208 + $0xd0] sm:$0xff] %v681
      %714 = vst [vmem:[%s208 + $0xd8] sm:$0xff] %v682
      %715 = vst [vmem:[%s208 + $0xe0] sm:$0xff] %v683
      %716 = vst [vmem:[%s208 + $0xe8] sm:$0xff] %v684
      %717 = vst [vmem:[%s208 + $0xf0] sm:$0xff] %v685
      %718 = vst [vmem:[%s208 + $0xf8] sm:$0xff] %v686
      %s719 = smul.u32 2, %s19
      %p720 = scmp.lt.s32.totalorder %s18, 1
      %s721 = scalar_select %p720, %s18, 1
      %p722 = scmp.lt.s32.totalorder %s719, 1
      %s723 = scalar_select %p722, %s719, 1
      %s724 = smul.addr %s721, 32
      %s725 = sadd.s32 %s723, %s724
      %s726 = smul.addr %s725, 8
      %s727 = scalar_lea.vmem %s3, %s726
      // Predicated region
      $region33: #{layernorm2d.1} parent=31 // pred_check
        %p728 = pneg %p116
      $region34: #{layernorm2d.1} parent=31 // pred_check_branch
        %730 = sbr.rel (%p728) target = $region36
      $region35: #{layernorm2d.1} parent=31 // pred_region
        %s731 = smul.u32 2, %s19
      $region36: #{layernorm2d.1} parent=31 // pred_fallthru
        _
    $region32: #{layernorm2d.1} parent=5 // pred_fallthru
      _
    %p732 = scmp.le.s32.totalorder 2, %s9
    // Predicated region
    $region37: #{layernorm2d.1} parent=5 // pred_check
      %p733 = pneg %p732
    $region38: #{layernorm2d.1} parent=5 // pred_check_branch
      %735 = sbr.rel (%p733) target = $region40
    $region39: #{layernorm2d.1} parent=5 // pred_region
      %s736 = ssub.s32 %s9, 2
      // Predicated region
      $region41: #{layernorm2d.1} parent=39 // pred_check
        %p737 = pneg %p122
      $region42: #{layernorm2d.1} parent=39 // pred_check_branch
        %739 = sbr.rel (%p737) target = $region44
      $region43: #{layernorm2d.1} parent=39 // pred_region
        %s740 = smul.u32 2, %s21
        %p741 = scmp.lt.s32.totalorder %s20, 1
        %s742 = scalar_select %p741, %s20, 1
        %p743 = scmp.lt.s32.totalorder %s740, 1
        %s744 = scalar_select %p743, %s740, 1
        %s745 = smul.addr %s742, 32
        %s746 = sadd.s32 %s744, %s745
        %s747 = smul.addr %s746, 8
        %s748 = scalar_lea.vmem %s3, %s747
      $region44: #{layernorm2d.1} parent=39 // pred_fallthru
        _
    $region40: #{layernorm2d.1} parent=5 // pred_fallthru
      _
  $region6: #{layernorm2d.1} parent=0 // loop_footer
    %s13 = sadd.s32 1, %s9
  $region7: #{layernorm2d.1} parent=0 // loop_footer_branch
    %8 = sbr.rel target = $region3
  $region8: #{layernorm2d.1} parent=0 // loop_exit
    _

</llo_original>
